<compile_context>
chip_gen: v7x
topology: tpu7x:2x2x1
jax: 0.10.0
libtpu: 0.0.40
codegen_flags: <defaults>
</compile_context>

<pallas_src>
import functools
import math

import jax
import jax.numpy as jnp
from jax.experimental import pallas as pl


def _attn_induction_kernel(tok_ref, embqkv_ref, mask_ref, wout_ref,
                           logits_ref, attnw_ref, *, B, L, D, Dp, V_emb):
    """Single-invocation forward.

    tok_ref    : (B*L, 1)        int32  token ids
    embqkv_ref : (V_emb, 3*Dp)   f32    embedding pre-multiplied fused q/k/v (lane-padded)
    mask_ref   : (B*L, B*L)      f32    block-diagonal additive attention mask (0 / -inf)
    wout_ref   : (Dp, Vp)        f32    fused out_proj chain, bias in row D, lane-padded
    logits_ref : (B*L, Vp)       f32    lane-dense padded logits
    attnw_ref  : (B*L, L)        f32    per-query attention rows (own batch block only)
    """
    BL = B * L

    # --- embedding lookup + fused Q/K/V projection + bias + scale: ONE MXU pass ---
    tok = tok_ref[...]                                                   # (BL, 1)
    vocab_iota = jax.lax.broadcasted_iota(jnp.int32, (BL, V_emb), 1)
    one_hot = jnp.where(tok == vocab_iota, 1.0, 0.0).astype(jnp.float32)
    qkv = jnp.dot(one_hot, embqkv_ref[...],
                  preferred_element_type=jnp.float32)                    # (BL, 3*Dp)

    # 128-lane-aligned slices: no cross-lane shuffles on the critical chain
    q = qkv[:, 0:Dp]
    k = qkv[:, Dp:2 * Dp]
    v = qkv[:, 2 * Dp:3 * Dp]

    # --- flattened-batch attention: one (BL, BL) score block ----------------------
    scores = jnp.einsum('qd,kd->qk', q, k,
                        preferred_element_type=jnp.float32)              # (BL, BL)
    scores = scores + mask_ref[...]
    m = jnp.max(scores, axis=-1, keepdims=True)
    e = jnp.exp(scores - m)
    s = jnp.sum(e, axis=-1, keepdims=True)
    attn = e * pl.reciprocal(s, approx=True)                             # EUP divide

    ctx = jnp.dot(attn, v, preferred_element_type=jnp.float32)           # (BL, Dp)

    # --- fused output projection, bias folded into wout row D ---------------------
    # lane D of ctx is a zero padding lane (D < Dp); set it to 1 so the GEMM adds
    # the fused output bias for free (exact — no extra operand, no VPU bias add).
    lane = jax.lax.broadcasted_iota(jnp.int32, (BL, Dp), 1)
    ctx = jnp.where(lane == D, 1.0, ctx)
    logits_ref[...] = jnp.dot(ctx, wout_ref[...],
                              preferred_element_type=jnp.float32)        # (BL, Vp)

    # --- per-query attention rows (2-D store) --------------------------------------
    # Cross-batch blocks are exactly 0 after the -inf mask, so summing the B column
    # blocks extracts each query's own (L,) row without a gather.
    attn_local = attn[:, 0:L]
    for b in range(1, B):
        attn_local = attn_local + attn[:, b * L:(b + 1) * L]
    attnw_ref[...] = attn_local                                          # (BL, L)


def prepare_fused_params(params):
    """One-time offline fusion / padding of the module parameters for the kernel."""
    V_emb, D = params["embedding"].shape
    V = params["w_out"].shape[1]
    scale = 1.0 / math.sqrt(D)
    Dp = ((D + 1 + 127) // 128) * 128       # >= D+1 so there is a free lane for the bias row
    Vp = ((V + 127) // 128) * 128

    emb = params["embedding"].astype(jnp.float32)
    # Fold embedding, per-projection bias and the 1/sqrt(D) scale (Q only) into one table.
    eq = emb @ (params["w_q"] * scale) + params["b_q"] * scale           # (V_emb, D)
    ek = emb @ params["w_k"] + params["b_k"]
    ev = emb @ params["w_v"] + params["b_v"]
    emb_qkv = jnp.zeros((V_emb, 3 * Dp), jnp.float32)
    emb_qkv = emb_qkv.at[:, 0:D].set(eq)
    emb_qkv = emb_qkv.at[:, Dp:Dp + D].set(ek)
    emb_qkv = emb_qkv.at[:, 2 * Dp:2 * Dp + D].set(ev)

    # (ctx @ Wo + bo) @ Wout + bout == ctx @ (Wo @ Wout) + (bo @ Wout + bout)
    w_fused = params["w_attn_out"] @ params["w_out"]                     # (D, V)
    b_fused = params["b_attn_out"] @ params["w_out"] + params["b_out"]   # (1, V)
    w_out_aug = jnp.zeros((Dp, Vp), jnp.float32)
    w_out_aug = w_out_aug.at[:D, :V].set(w_fused)
    w_out_aug = w_out_aug.at[D, :V].set(b_fused[0])    # bias row, hit by ctx's "1" lane

    return {
        "emb_qkv": emb_qkv,
        "w_out_aug": w_out_aug,
        "d_model": int(D), "d_pad": int(Dp),
        "vocab_emb": int(V_emb), "vocab_out": int(V),
    }


def prepare_attention_mask(attn_mask, batch):
    """One-time build of the flattened block-diagonal additive mask (B*L, B*L)."""
    L = attn_mask.shape[0]
    m = jnp.asarray(attn_mask, jnp.float32)
    full = jnp.full((batch * L, batch * L), -jnp.inf, jnp.float32)
    for b in range(batch):
        full = full.at[b * L:(b + 1) * L, b * L:(b + 1) * L].set(m)
    return full


def attn_model_induction_forward(x_tokens, attn_mask_full, fused):
    """JAX/Pallas forward matching AttnModelInduction.forward.

    x_tokens       : (B, L) int32 token ids in [0, vocab_size + 3)
    attn_mask_full : (B*L, B*L) f32 additive mask from prepare_attention_mask (built once)
    fused          : output of prepare_fused_params
    returns        : (logits (B, L, V), attn_weights (B, L, L))
    """
    B, L = x_tokens.shape
    D, Dp = fused["d_model"], fused["d_pad"]
    V_emb, V = fused["vocab_emb"], fused["vocab_out"]
    Vp = fused["w_out_aug"].shape[1]

    tok = x_tokens.reshape(B * L, 1).astype(jnp.int32)
    kernel = functools.partial(_attn_induction_kernel,
                               B=B, L=L, D=D, Dp=Dp, V_emb=V_emb)

    # Single invocation (no grid): everything fits trivially in VMEM at these shapes,
    # so per-grid-step pipeline overhead (~0.35us/step) is avoided entirely.
    logits_padded, attn_2d = pl.pallas_call(
        kernel,
        out_shape=[
            jax.ShapeDtypeStruct((B * L, Vp), jnp.float32),
            jax.ShapeDtypeStruct((B * L, L), jnp.float32),
        ],
    )(tok, fused["emb_qkv"], attn_mask_full, fused["w_out_aug"])

    logits = logits_padded[:, :V].reshape(B, L, V)
    attn_weights = attn_2d.reshape(B, L, L)
    return logits, attn_weights


def init_params(key, seq_len, d_model, vocab_size):
    """Raw (unfused) parameters, mirroring the PyTorch module's tensors (stored (in, out))."""
    V = vocab_size + 3
    ks = jax.random.split(key, 8)
    s = 0.02
    return {
        "embedding": s * jax.random.normal(ks[0], (V, d_model), jnp.float32),
        "w_q": s * jax.random.normal(ks[1], (d_model, d_model), jnp.float32),
        "w_k": s * jax.random.normal(ks[2], (d_model, d_model), jnp.float32),
        "w_v": s * jax.random.normal(ks[3], (d_model, d_model), jnp.float32),
        "b_q": jnp.zeros((1, d_model), jnp.float32),
        "b_k": jnp.zeros((1, d_model), jnp.float32),
        "b_v": jnp.zeros((1, d_model), jnp.float32),
        "w_attn_out": s * jax.random.normal(ks[4], (d_model, d_model), jnp.float32),
        "b_attn_out": jnp.zeros((1, d_model), jnp.float32),
        "w_out": s * jax.random.normal(ks[5], (d_model, V), jnp.float32),
        "b_out": jnp.zeros((1, V), jnp.float32),
    }


def _reference_forward(x_tokens, attn_mask, params):
    """Pure-JAX reference of AttnModelInduction.forward (single head, batch_first)."""
    D = params["embedding"].shape[1]
    scale = 1.0 / math.sqrt(D)
    x = params["embedding"][x_tokens]                                    # (B, L, D)
    q = x @ params["w_q"] + params["b_q"]
    k = x @ params["w_k"] + params["b_k"]
    v = x @ params["w_v"] + params["b_v"]
    scores = jnp.einsum('bqd,bkd->bqk', q, k) * scale + attn_mask[None]
    attn = jax.nn.softmax(scores, axis=-1)
    ctx = jnp.einsum('bqk,bkd->bqd', attn, v)
    out = ctx @ params["w_attn_out"] + params["b_attn_out"]
    logits = out @ params["w_out"] + params["b_out"]
    return logits, attn


if __name__ == "__main__":
    seq_len = 8
    d_model = 32
    vocab_size = 8
    batch = 2
    V = vocab_size + 3

    key = jax.random.PRNGKey(0)
    k_tok, k_param = jax.random.split(key)

    params = init_params(k_param, seq_len, d_model, vocab_size)
    fused = prepare_fused_params(params)
    x_tokens = jax.random.randint(k_tok, (batch, seq_len), 0, V, dtype=jnp.int32)

    # causal additive mask, same convention as torch float attn_mask (0 allowed, -inf masked)
    causal = jnp.tril(jnp.ones((seq_len, seq_len), dtype=bool))
    attn_mask = jnp.where(causal, 0.0, -jnp.inf).astype(jnp.float32)
    attn_mask_full = prepare_attention_mask(attn_mask, batch)            # built once, offline

    logits, attn_weights = attn_model_induction_forward(x_tokens, attn_mask_full, fused)
    jax.block_until_ready((logits, attn_weights))

    assert logits.shape == (batch, seq_len, V)
    assert attn_weights.shape == (batch, seq_len, seq_len)
    assert bool(jnp.all(jnp.isfinite(logits)))
    # softmax rows should sum to ~1 (approx EUP reciprocal => loose tolerance)
    assert bool(jnp.allclose(jnp.sum(attn_weights, axis=-1), 1.0, atol=5e-2))

    # cross-check against the pure-JAX reference of the PyTorch module
    ref_logits, ref_attn = _reference_forward(x_tokens, attn_mask, params)
    assert bool(jnp.allclose(attn_weights, ref_attn, atol=1e-2))
    assert bool(jnp.allclose(logits, ref_logits, atol=1e-2))

    print("KERNEL_OK")
</pallas_src>

<mosaic_0001>
module attributes {stable_mosaic.version = 11 : i64} {
  func.func @_attn_induction_kernel(%arg0: memref<16x1xi32, #tpu.memory_space<vmem>>, %arg1: memref<11x384xf32, #tpu.memory_space<vmem>>, %arg2: memref<16x16xf32, #tpu.memory_space<vmem>>, %arg3: memref<128x128xf32, #tpu.memory_space<vmem>>, %arg4: memref<16x128xf32, #tpu.memory_space<vmem>>, %arg5: memref<16x8xf32, #tpu.memory_space<vmem>>) attributes {dimension_semantics = [], scalar_prefetch = 0 : i64, scratch_operands = 0 : i64, tpu.core_type = #tpu.core_type<tc>} {
    %c0 = arith.constant 0 : index
    %c0_0 = arith.constant 0 : index
    %0 = vector.load %arg0[%c0, %c0_0] : memref<16x1xi32, #tpu.memory_space<vmem>>, vector<16x1xi32>
    %1 = tpu.iota {dimensions = array<i32: 1>} : vector<16x11xi32>
    %2 = vector.broadcast %0 : vector<16x1xi32> to vector<16x11xi32>
    %3 = arith.cmpi eq, %2, %1 : vector<16x11xi32>
    %cst = arith.constant 1.000000e+00 : f32
    %cst_1 = arith.constant 0.000000e+00 : f32
    %4 = vector.broadcast %cst : f32 to vector<16x11xf32>
    %5 = vector.broadcast %cst_1 : f32 to vector<16x11xf32>
    %6 = arith.select %3, %4, %5 : vector<16x11xi1>, vector<16x11xf32>
    %c0_2 = arith.constant 0 : index
    %c0_3 = arith.constant 0 : index
    %7 = vector.load %arg1[%c0_2, %c0_3] : memref<11x384xf32, #tpu.memory_space<vmem>>, vector<11x384xf32>
    %cst_4 = arith.constant dense<0.000000e+00> : vector<16x384xf32>
    %8 = tpu.matmul %6, %7, %cst_4 {dimension_numbers = #tpu.dot_dimension_numbers<[1], [0], [0], [1], [0, 0, 1, 1], [], []>} : vector<16x11xf32>, vector<11x384xf32>, vector<16x384xf32> -> vector<16x384xf32>
    %9 = vector.extract_strided_slice %8 {offsets = [0, 0], sizes = [16, 128], strides = [1, 1]} : vector<16x384xf32> to vector<16x128xf32>
    %10 = vector.extract_strided_slice %8 {offsets = [0, 128], sizes = [16, 128], strides = [1, 1]} : vector<16x384xf32> to vector<16x128xf32>
    %11 = vector.extract_strided_slice %8 {offsets = [0, 256], sizes = [16, 128], strides = [1, 1]} : vector<16x384xf32> to vector<16x128xf32>
    "tpu.trace_start"() <{level = 10 : i32, message = "qd,kd->qk"}> : () -> ()
    %cst_5 = arith.constant dense<0.000000e+00> : vector<16x16xf32>
    %12 = tpu.matmul %9, %10, %cst_5 {dimension_numbers = #tpu.dot_dimension_numbers<[1], [1], [0], [0], [0, 0, 1, 0], [], []>} : vector<16x128xf32>, vector<16x128xf32>, vector<16x16xf32> -> vector<16x16xf32>
    "tpu.trace_stop"() : () -> ()
    %c0_6 = arith.constant 0 : index
    %c0_7 = arith.constant 0 : index
    %13 = vector.load %arg2[%c0_6, %c0_7] : memref<16x16xf32, #tpu.memory_space<vmem>>, vector<16x16xf32>
    %14 = arith.addf %12, %13 : vector<16x16xf32>
    %cst_8 = arith.constant dense<0xFF800000> : vector<16xf32>
    %15 = vector.multi_reduction <maximumf>, %14, %cst_8 [1] : vector<16x16xf32> to vector<16xf32>
    %16 = vector.shape_cast %15 : vector<16xf32> to vector<16x1xf32>
    %17 = vector.broadcast %16 : vector<16x1xf32> to vector<16x16xf32>
    %18 = arith.subf %14, %17 : vector<16x16xf32>
    %19 = math.exp %18 : vector<16x16xf32>
    %cst_9 = arith.constant dense<0.000000e+00> : vector<16xf32>
    %20 = vector.multi_reduction <add>, %19, %cst_9 [1] : vector<16x16xf32> to vector<16xf32>
    %21 = vector.shape_cast %20 : vector<16xf32> to vector<16x1xf32>
    %22 = tpu.reciprocal %21 {approx = true} : vector<16x1xf32> -> vector<16x1xf32>
    %23 = vector.broadcast %22 : vector<16x1xf32> to vector<16x16xf32>
    %24 = arith.mulf %19, %23 : vector<16x16xf32>
    %cst_10 = arith.constant dense<0.000000e+00> : vector<16x128xf32>
    %25 = tpu.matmul %24, %11, %cst_10 {dimension_numbers = #tpu.dot_dimension_numbers<[1], [0], [0], [1], [0, 0, 1, 1], [], []>} : vector<16x16xf32>, vector<16x128xf32>, vector<16x128xf32> -> vector<16x128xf32>
    %26 = tpu.iota {dimensions = array<i32: 1>} : vector<16x128xi32>
    %c32_i32 = arith.constant 32 : i32
    %27 = vector.broadcast %c32_i32 : i32 to vector<16x128xi32>
    %28 = arith.cmpi eq, %26, %27 : vector<16x128xi32>
    %cst_11 = arith.constant 1.000000e+00 : f32
    %29 = vector.broadcast %cst_11 : f32 to vector<16x128xf32>
    %30 = arith.select %28, %29, %25 : vector<16x128xi1>, vector<16x128xf32>
    %c0_12 = arith.constant 0 : index
    %c0_13 = arith.constant 0 : index
    %31 = vector.load %arg3[%c0_12, %c0_13] : memref<128x128xf32, #tpu.memory_space<vmem>>, vector<128x128xf32>
    %cst_14 = arith.constant dense<0.000000e+00> : vector<16x128xf32>
    %32 = tpu.matmul %30, %31, %cst_14 {dimension_numbers = #tpu.dot_dimension_numbers<[1], [0], [0], [1], [0, 0, 1, 1], [], []>} : vector<16x128xf32>, vector<128x128xf32>, vector<16x128xf32> -> vector<16x128xf32>
    %c0_15 = arith.constant 0 : index
    %c0_16 = arith.constant 0 : index
    %33 = vector.load %arg4[%c0_15, %c0_16] : memref<16x128xf32, #tpu.memory_space<vmem>>, vector<16x128xf32>
    tpu.vector_store %arg4[%c0_15, %c0_16], %32 {strides = array<i32>} : memref<16x128xf32, #tpu.memory_space<vmem>>, vector<16x128xf32>,
    %34 = vector.extract_strided_slice %24 {offsets = [0, 0], sizes = [16, 8], strides = [1, 1]} : vector<16x16xf32> to vector<16x8xf32>
    %35 = vector.extract_strided_slice %24 {offsets = [0, 8], sizes = [16, 8], strides = [1, 1]} : vector<16x16xf32> to vector<16x8xf32>
    %36 = arith.addf %34, %35 : vector<16x8xf32>
    %c0_17 = arith.constant 0 : index
    %c0_18 = arith.constant 0 : index
    %37 = vector.load %arg5[%c0_17, %c0_18] : memref<16x8xf32, #tpu.memory_space<vmem>>, vector<16x8xf32>
    tpu.vector_store %arg5[%c0_17, %c0_18], %36 {strides = array<i32>} : memref<16x8xf32, #tpu.memory_space<vmem>>, vector<16x8xf32>,
    return
  }
}

</mosaic_0001>

<llo_original>
// kernel: tpu_custom_call.1
$region0: #{tpu_custom_call.1}
  #allocation0 [shape = 'u32[]', space=smem, size = 0x4, offset = 0x4, fixed_abs, tag = 'smem constant byte address 0x4 - core index']
  #allocation1 [shape = 'u32[144,128]{1,0:T(1,128)}', space=vmem, size = 0x12000, scoped, tag = 'internal scratch']
  %s0 = inlined_call_operand.vmem [shape: s32[16,1], index: 0, kind: input, shape index: {}]
  %s1 = inlined_call_operand.hbm [shape: f32[11,384], index: 1, kind: input, shape index: {}]
  %s2 = inlined_call_operand.vmem [shape: f32[16,16], index: 2, kind: input, shape index: {}]
  %s3 = inlined_call_operand.hbm [shape: f32[128,128], index: 3, kind: input, shape index: {}]
  %s4 = inlined_call_operand.hbm [shape: f32[16,128], index: 4, kind: output, shape index: {0}]
  %s5 = inlined_call_operand.vmem [shape: f32[16,8], index: 5, kind: output, shape index: {1}]
  %6 = xla_tuple %s4, %s5
  %s7 = sld [smem:[#allocation0]]
  $region42: #{tpu_custom_call.1} parent=0
    _
  %s9 = ssub.s32 1, %s7
  %s10 = scalar_select 0, %s9, %s7
  $region1: #{tpu_custom_call.1} parent=0
    #allocation2 [shape = 'u8[24576]{0}', space=vmem, size = 0x6000, scoped, tag = 'input window, operand 1, single buffered']
    #allocation3 [shape = 's32[1]{0}', space=sflag, size = 0x4, scoped, tag = 'scoped memory for tpu_custom_call.1']
    #allocation4 [shape = 's32[1]{0}', space=sflag, size = 0x4, scoped, tag = 'scoped memory for tpu_custom_call.1']
    #allocation5 [shape = 'u8[65536]{0}', space=vmem, size = 0x10000, scoped, tag = 'input window, operand 3, single buffered']
    #allocation6 [shape = 's32[1]{0}', space=sflag, size = 0x4, scoped, tag = 'scoped memory for tpu_custom_call.1']
    #allocation7 [shape = 'u8[8192]{0}', space=vmem, size = 0x2000, scoped, tag = 'output window, operand 0, single buffered']
    %11 = vsyncpa [#allocation3], 0
    %12 = vsyncpa [#allocation6], 0
    %13 = vsyncpa [#allocation4], 0
    // Predicated region
    $region2: #{tpu_custom_call.1} parent=1 // pred_check
      _
    $region3: #{tpu_custom_call.1} parent=1 // pred_check_branch
      %15 = sbr.rel (0) target = $region5
    $region4: #{tpu_custom_call.1} parent=1 // pred_region
      _
    $region5: #{tpu_custom_call.1} parent=1 // pred_fallthru
      _
    // Predicated region
    $region6: #{tpu_custom_call.1} parent=1 // pred_check
      _
    $region7: #{tpu_custom_call.1} parent=1 // pred_check_branch
      %17 = sbr.rel (0) target = $region9
    $region8: #{tpu_custom_call.1} parent=1 // pred_region
      %s19 = ssub.s32 768, 768
      %20 = vsyncadd [#allocation3], %s19
      %s21 = sshll.u32 [#allocation2], 4
      %s22 = int_to_ptr.vmem [resolvable:$true] %s21
      %27 = dma.hbm_to_vmem [thread:$0]  %s1, 768, %s22, [#allocation3], 384, 384, 24
    $region9: #{tpu_custom_call.1} parent=1 // pred_fallthru
      _
    // Predicated region
    $region10: #{tpu_custom_call.1} parent=1 // pred_check
      _
    $region11: #{tpu_custom_call.1} parent=1 // pred_check_branch
      %29 = sbr.rel (0) target = $region13
    $region12: #{tpu_custom_call.1} parent=1 // pred_region
      _
    $region13: #{tpu_custom_call.1} parent=1 // pred_fallthru
      _
    // Predicated region
    $region14: #{tpu_custom_call.1} parent=1 // pred_check
      _
    $region15: #{tpu_custom_call.1} parent=1 // pred_check_branch
      %31 = sbr.rel (0) target = $region17
    $region16: #{tpu_custom_call.1} parent=1 // pred_region
      %s33 = ssub.s32 2048, 2048
      %34 = vsyncadd [#allocation6], %s33
      %s35 = sshll.u32 [#allocation5], 4
      %s36 = int_to_ptr.vmem [resolvable:$true] %s35
      %41 = dma.hbm_to_vmem [thread:$0]  %s3, 2048, %s36, [#allocation6], 128, 128, 8
    $region17: #{tpu_custom_call.1} parent=1 // pred_fallthru
      _
    // Predicated region
    $region18: #{tpu_custom_call.1} parent=1 // pred_check
      _
    $region19: #{tpu_custom_call.1} parent=1 // pred_check_branch
      %43 = sbr.rel (0) target = $region21
    $region20: #{tpu_custom_call.1} parent=1 // pred_region
      %44 = dma.done [#allocation3], 768
    $region21: #{tpu_custom_call.1} parent=1 // pred_fallthru
      _
    // Predicated region
    $region22: #{tpu_custom_call.1} parent=1 // pred_check
      _
    $region23: #{tpu_custom_call.1} parent=1 // pred_check_branch
      %46 = sbr.rel (0) target = $region25
    $region24: #{tpu_custom_call.1} parent=1 // pred_region
      %47 = dma.done [#allocation6], 2048
    $region25: #{tpu_custom_call.1} parent=1 // pred_fallthru
      _
    %v48 = vld [vmem:[%s0] sm:$0xff]
    %v49 = vld [vmem:[%s0 + $0x8] sm:$0xff]
    %v50 = vlaneseq
    %v51 = vand.u32 %v50, 127
    %52 = vset.pattern.permute.xlu0 0
    %53 = vperm.xlu0 %52, %v48
    %v54 = vpop.permute.xlu0 %53
    %55 = vset.pattern.permute.xlu0 0
    %56 = vperm.xlu0 %55, %v49
    %v57 = vpop.permute.xlu0 %56
    %vm58 = vcmp.eq.s32.totalorder %v54, %v51
    %vm59 = vcmp.eq.s32.totalorder %v57, %v51
    %v60 = vsel %vm58, 1.0, 0.0
    %v61 = vsel %vm59, 1.0, 0.0
    %v62 = vld [vmem:[#allocation2] sm:$0xff]
    %v63 = vld [vmem:[#allocation2 + $0x8] sm:$0xff]
    %v64 = vld [vmem:[#allocation2 + $0x10] sm:$0xff]
    %v65 = vld [vmem:[#allocation2 + $0x18] sm:$0x7]
    %v66 = vld [vmem:[#allocation2 + $0x20] sm:$0x7]
    %v67 = vld [vmem:[#allocation2 + $0x28] sm:$0x7]
    %vm68 = vcmask 89088
    %v70 = vsel %vm68, %v60, 0
    %v73 = vsel %vm68, %v61, 0
    %vm75 = vcmask 1042432
    %v77 = vsel %vm75, %v65, 0
    %v80 = vsel %vm75, %v66, 0
    %v83 = vsel %vm75, %v67, 0
    %85 = vmatprep.subr.mxu0 %v63
    %86 = vmatpush1.msra.mxu0 %v62
    %87 = vmatprep.subr.mxu0 %v80
    %88 = vmatpush1.msra.mxu0 %v77
    %89 = vmatprep.subr.mxu0 0.0
    %90 = vmatpush1.msra.mxu0 0.0
    %91 = vmatprep.subr.mxu0 0.0
    %92 = vmatpush1.msra.mxu0 0.0
    %93 = vmatprep.subr.mxu0 0.0
    %94 = vmatpush1.msra.mxu0 0.0
    %95 = vmatprep.subr.mxu0 0.0
    %96 = vmatpush1.msra.mxu0 0.0
    %97 = vmatprep.subr.mxu0 0.0
    %98 = vmatpush1.msra.mxu0 0.0
    %99 = vmatprep.subr.mxu0 0.0
    %100 = vmatpush1.msra.mxu0 0.0
    %101 = vmatprep.subr.mxu0 0.0
    %102 = vmatpush1.msra.mxu0 0.0
    %103 = vmatprep.subr.mxu0 0.0
    %104 = vmatpush1.msra.mxu0 0.0
    %105 = vmatprep.subr.mxu0 0.0
    %106 = vmatpush1.msra.mxu0 0.0
    %107 = vmatprep.subr.mxu0 0.0
    %108 = vmatpush1.msra.mxu0 0.0
    %109 = vmatprep.subr.mxu0 0.0
    %110 = vmatpush1.msra.mxu0 0.0
    %111 = vmatprep.subr.mxu0 0.0
    %112 = vmatpush1.msra.mxu0 0.0
    %113 = vmatprep.subr.mxu0 0.0
    %114 = vmatpush1.msra.mxu0 0.0
    %115 = vmatprep.subr.mxu0 0.0
    %116 = vmatpush1.msra.mxu0 0.0
    %117 = vmatprep.subr.mxu0 0.0
    %118 = vmatpush1.msra.mxu0 0.0
    %119 = vmatprep.subr.mxu0 0.0
    %120 = vmatpush1.msra.mxu0 0.0
    %121 = vmatprep.subr.mxu0 0.0
    %122 = vmatpush1.msra.mxu0 0.0
    %123 = vmatprep.subr.mxu0 0.0
    %124 = vmatpush1.msra.mxu0 0.0
    %125 = vmatprep.subr.mxu0 0.0
    %126 = vmatpush1.msra.mxu0 0.0
    %127 = vmatprep.subr.mxu0 0.0
    %128 = vmatpush1.msra.mxu0 0.0
    %129 = vmatprep.subr.mxu0 0.0
    %130 = vmatpush1.msra.mxu0 0.0
    %131 = vmatprep.subr.mxu0 0.0
    %132 = vmatpush1.msra.mxu0 0.0
    %133 = vmatprep.subr.mxu0 0.0
    %134 = vmatpush1.msra.mxu0 0.0
    %135 = vmatprep.subr.mxu0 0.0
    %136 = vmatpush1.msra.mxu0 0.0
    %137 = vmatprep.subr.mxu0 0.0
    %138 = vmatpush1.msra.mxu0 0.0
    %139 = vmatprep.subr.mxu0 0.0
    %140 = vmatpush1.msra.mxu0 0.0
    %141 = vmatprep.subr.mxu0 0.0
    %142 = vmatpush1.msra.mxu0 0.0
    %143 = vmatprep.subr.mxu0 0.0
    %144 = vmatpush1.msra.mxu0 0.0
    %145 = vmatprep.subr.mxu0 0.0
    %146 = vmatpush1.msra.mxu0 0.0
    %147 = vmatprep.subr.mxu0 0.0
    %148 = vmatpush1.msra.mxu0 0.0
    %149 = vmatprep.mubr.f32.mxu0 0.0
    %150 = vmatmul.mubr.f32.gmra.mrb[0].mxu0 %v70
    %v151 = vpop.f32.mrb[0].mxu0
    %v152 = vadd.f32 0.0, %v151
    %v153 = vpop.f32.mrb[0].mxu0
    %v154 = vadd.f32 0.0, %v153
    %155 = vmatprep.mubr.f32.mxu0 0.0
    %156 = vmatmul.mubr.f32.gmra.mrb[0].mxu0 %v73
    %v157 = vpop.f32.mrb[0].mxu0
    %v158 = vadd.f32 0.0, %v157
    %v159 = vpop.f32.mrb[0].mxu0
    %v160 = vadd.f32 0.0, %v159
    %161 = vdwg.mxu0
    %162 = vmatprep.subr.mxu0 0.0
    %163 = vmatpush1.msra.mxu0 %v64
    %164 = vmatprep.subr.mxu0 0.0
    %165 = vmatpush1.msra.mxu0 %v83
    %166 = vmatprep.subr.mxu0 0.0
    %167 = vmatpush1.msra.mxu0 0.0
    %168 = vmatprep.subr.mxu0 0.0
    %169 = vmatpush1.msra.mxu0 0.0
    %170 = vmatprep.subr.mxu0 0.0
    %171 = vmatpush1.msra.mxu0 0.0
    %172 = vmatprep.subr.mxu0 0.0
    %173 = vmatpush1.msra.mxu0 0.0
    %174 = vmatprep.subr.mxu0 0.0
    %175 = vmatpush1.msra.mxu0 0.0
    %176 = vmatprep.subr.mxu0 0.0
    %177 = vmatpush1.msra.mxu0 0.0
    %178 = vmatprep.subr.mxu0 0.0
    %179 = vmatpush1.msra.mxu0 0.0
    %180 = vmatprep.subr.mxu0 0.0
    %181 = vmatpush1.msra.mxu0 0.0
    %182 = vmatprep.subr.mxu0 0.0
    %183 = vmatpush1.msra.mxu0 0.0
    %184 = vmatprep.subr.mxu0 0.0
    %185 = vmatpush1.msra.mxu0 0.0
    %186 = vmatprep.subr.mxu0 0.0
    %187 = vmatpush1.msra.mxu0 0.0
    %188 = vmatprep.subr.mxu0 0.0
    %189 = vmatpush1.msra.mxu0 0.0
    %190 = vmatprep.subr.mxu0 0.0
    %191 = vmatpush1.msra.mxu0 0.0
    %192 = vmatprep.subr.mxu0 0.0
    %193 = vmatpush1.msra.mxu0 0.0
    %194 = vmatprep.subr.mxu0 0.0
    %195 = vmatpush1.msra.mxu0 0.0
    %196 = vmatprep.subr.mxu0 0.0
    %197 = vmatpush1.msra.mxu0 0.0
    %198 = vmatprep.subr.mxu0 0.0
    %199 = vmatpush1.msra.mxu0 0.0
    %200 = vmatprep.subr.mxu0 0.0
    %201 = vmatpush1.msra.mxu0 0.0
    %202 = vmatprep.subr.mxu0 0.0
    %203 = vmatpush1.msra.mxu0 0.0
    %204 = vmatprep.subr.mxu0 0.0
    %205 = vmatpush1.msra.mxu0 0.0
    %206 = vmatprep.subr.mxu0 0.0
    %207 = vmatpush1.msra.mxu0 0.0
    %208 = vmatprep.subr.mxu0 0.0
    %209 = vmatpush1.msra.mxu0 0.0
    %210 = vmatprep.subr.mxu0 0.0
    %211 = vmatpush1.msra.mxu0 0.0
    %212 = vmatprep.subr.mxu0 0.0
    %213 = vmatpush1.msra.mxu0 0.0
    %214 = vmatprep.subr.mxu0 0.0
    %215 = vmatpush1.msra.mxu0 0.0
    %216 = vmatprep.subr.mxu0 0.0
    %217 = vmatpush1.msra.mxu0 0.0
    %218 = vmatprep.subr.mxu0 0.0
    %219 = vmatpush1.msra.mxu0 0.0
    %220 = vmatprep.subr.mxu0 0.0
    %221 = vmatpush1.msra.mxu0 0.0
    %222 = vmatprep.subr.mxu0 0.0
    %223 = vmatpush1.msra.mxu0 0.0
    %224 = vmatprep.subr.mxu0 0.0
    %225 = vmatpush1.msra.mxu0 0.0
    %226 = vmatprep.mubr.f32.mxu0 0.0
    %227 = vmatmul.mubr.f32.gmra.mrb[0].mxu0 %v70
    %v228 = vpop.f32.mrb[0].mxu0
    %v229 = vadd.f32 0.0, %v228
    %v230 = vpop.f32.mrb[0].mxu0
    %231 = vmatprep.mubr.f32.mxu0 0.0
    %232 = vmatmul.mubr.f32.gmra.mrb[0].mxu0 %v73
    %v233 = vpop.f32.mrb[0].mxu0
    %v234 = vadd.f32 0.0, %v233
    %v235 = vpop.f32.mrb[0].mxu0
    %236 = vdwg.mxu0
    %v237 = vld [vmem:[%s2] sm:$0xff]
    %v238 = vld [vmem:[%s2 + $0x8] sm:$0xff]
    %239 = vmatprep.subr.mxu0 0.0
    %240 = vmatpush1.xpose.msra.mxu0 %v154
    %241 = vmatprep.subr.mxu0 0.0
    %242 = vmatpush1.xpose.msra.mxu0 %v160
    %243 = vmatprep.subr.mxu0 0.0
    %244 = vmatpush1.xpose.msra.mxu0 0.0
    %245 = vmatprep.subr.mxu0 0.0
    %246 = vmatpush1.xpose.msra.mxu0 0.0
    %247 = vmatprep.subr.mxu0 0.0
    %248 = vmatpush1.xpose.msra.mxu0 0.0
    %249 = vmatprep.subr.mxu0 0.0
    %250 = vmatpush1.xpose.msra.mxu0 0.0
    %251 = vmatprep.subr.mxu0 0.0
    %252 = vmatpush1.xpose.msra.mxu0 0.0
    %253 = vmatprep.subr.mxu0 0.0
    %254 = vmatpush1.xpose.msra.mxu0 0.0
    %255 = vmatprep.subr.mxu0 0.0
    %256 = vmatpush1.xpose.msra.mxu0 0.0
    %257 = vmatprep.subr.mxu0 0.0
    %258 = vmatpush1.xpose.msra.mxu0 0.0
    %259 = vmatprep.subr.mxu0 0.0
    %260 = vmatpush1.xpose.msra.mxu0 0.0
    %261 = vmatprep.subr.mxu0 0.0
    %262 = vmatpush1.xpose.msra.mxu0 0.0
    %263 = vmatprep.subr.mxu0 0.0
    %264 = vmatpush1.xpose.msra.mxu0 0.0
    %265 = vmatprep.subr.mxu0 0.0
    %266 = vmatpush1.xpose.msra.mxu0 0.0
    %267 = vmatprep.subr.mxu0 0.0
    %268 = vmatpush1.xpose.msra.mxu0 0.0
    %269 = vmatprep.subr.mxu0 0.0
    %270 = vmatpush1.xpose.msra.mxu0 0.0
    %271 = vmatprep.subr.mxu0 0.0
    %272 = vmatpush1.xpose.msra.mxu0 0.0
    %273 = vmatprep.subr.mxu0 0.0
    %274 = vmatpush1.xpose.msra.mxu0 0.0
    %275 = vmatprep.subr.mxu0 0.0
    %276 = vmatpush1.xpose.msra.mxu0 0.0
    %277 = vmatprep.subr.mxu0 0.0
    %278 = vmatpush1.xpose.msra.mxu0 0.0
    %279 = vmatprep.subr.mxu0 0.0
    %280 = vmatpush1.xpose.msra.mxu0 0.0
    %281 = vmatprep.subr.mxu0 0.0
    %282 = vmatpush1.xpose.msra.mxu0 0.0
    %283 = vmatprep.subr.mxu0 0.0
    %284 = vmatpush1.xpose.msra.mxu0 0.0
    %285 = vmatprep.subr.mxu0 0.0
    %286 = vmatpush1.xpose.msra.mxu0 0.0
    %287 = vmatprep.subr.mxu0 0.0
    %288 = vmatpush1.xpose.msra.mxu0 0.0
    %289 = vmatprep.subr.mxu0 0.0
    %290 = vmatpush1.xpose.msra.mxu0 0.0
    %291 = vmatprep.subr.mxu0 0.0
    %292 = vmatpush1.xpose.msra.mxu0 0.0
    %293 = vmatprep.subr.mxu0 0.0
    %294 = vmatpush1.xpose.msra.mxu0 0.0
    %295 = vmatprep.subr.mxu0 0.0
    %296 = vmatpush1.xpose.msra.mxu0 0.0
    %297 = vmatprep.subr.mxu0 0.0
    %298 = vmatpush1.xpose.msra.mxu0 0.0
    %299 = vmatprep.subr.mxu0 0.0
    %300 = vmatpush1.xpose.msra.mxu0 0.0
    %301 = vmatprep.subr.mxu0 0.0
    %302 = vmatpush1.xpose.msra.mxu0 0.0
    %303 = vmatprep.mubr.f32.mxu0 0.0
    %304 = vmatmul.mubr.f32.gmra.mrb[0].mxu0 %v152
    %v305 = vpop.f32.mrb[0].mxu0
    %v306 = vadd.f32 %v237, %v305
    %v307 = vpop.f32.mrb[0].mxu0
    %308 = vmatprep.mubr.f32.mxu0 0.0
    %309 = vmatmul.mubr.f32.gmra.mrb[0].mxu0 %v158
    %v310 = vpop.f32.mrb[0].mxu0
    %v311 = vadd.f32 %v238, %v310
    %v312 = vpop.f32.mrb[0].mxu0
    %313 = vdwg.mxu0
    %vm314 = vcmask 130048
    %v315 = vsel %vm314, %v306, -inf
    %316 = vmax.xlane.f32.xlu0 %v315
    %v317 = vpop.xlane.xlu0 %316
    %v318 = vsel %vm314, %v311, -inf
    %319 = vmax.xlane.f32.xlu0 %v318
    %v320 = vpop.xlane.xlu0 %319
    %v321 = vsub.f32 %v306, %v317
    %v322 = vsub.f32 %v311, %v320
    %v323 = vmul.f32 %v321, 1.442695
    %v324 = vpow.pop %v323
    %v325 = vmul.f32 %v322, 1.442695
    %v326 = vpow.pop %v325
    %v327 = vsel %vm314, %v324, 0.0
    %328 = vadd.xlane.f32.xlu0 %v327
    %v329 = vpop.xlane.xlu0 %328
    %v330 = vsel %vm314, %v326, 0.0
    %331 = vadd.xlane.f32.xlu0 %v330
    %v332 = vpop.xlane.xlu0 %331
    %v333 = vrcp.pop %v329
    %v334 = vrcp.pop %v332
    %v335 = vmul.f32 %v324, %v333
    %v336 = vmul.f32 %v326, %v334
    %v338 = vsel %vm314, %v335, 0
    %v341 = vsel %vm314, %v336, 0
    %343 = vmatprep.subr.mxu0 0.0
    %344 = vmatpush1.msra.mxu0 %v229
    %345 = vmatprep.subr.mxu0 0.0
    %346 = vmatpush1.msra.mxu0 %v234
    %347 = vmatprep.subr.mxu0 0.0
    %348 = vmatpush1.msra.mxu0 0.0
    %349 = vmatprep.subr.mxu0 0.0
    %350 = vmatpush1.msra.mxu0 0.0
    %351 = vmatprep.subr.mxu0 0.0
    %352 = vmatpush1.msra.mxu0 0.0
    %353 = vmatprep.subr.mxu0 0.0
    %354 = vmatpush1.msra.mxu0 0.0
    %355 = vmatprep.subr.mxu0 0.0
    %356 = vmatpush1.msra.mxu0 0.0
    %357 = vmatprep.subr.mxu0 0.0
    %358 = vmatpush1.msra.mxu0 0.0
    %359 = vmatprep.subr.mxu0 0.0
    %360 = vmatpush1.msra.mxu0 0.0
    %361 = vmatprep.subr.mxu0 0.0
    %362 = vmatpush1.msra.mxu0 0.0
    %363 = vmatprep.subr.mxu0 0.0
    %364 = vmatpush1.msra.mxu0 0.0
    %365 = vmatprep.subr.mxu0 0.0
    %366 = vmatpush1.msra.mxu0 0.0
    %367 = vmatprep.subr.mxu0 0.0
    %368 = vmatpush1.msra.mxu0 0.0
    %369 = vmatprep.subr.mxu0 0.0
    %370 = vmatpush1.msra.mxu0 0.0
    %371 = vmatprep.subr.mxu0 0.0
    %372 = vmatpush1.msra.mxu0 0.0
    %373 = vmatprep.subr.mxu0 0.0
    %374 = vmatpush1.msra.mxu0 0.0
    %375 = vmatprep.subr.mxu0 0.0
    %376 = vmatpush1.msra.mxu0 0.0
    %377 = vmatprep.subr.mxu0 0.0
    %378 = vmatpush1.msra.mxu0 0.0
    %379 = vmatprep.subr.mxu0 0.0
    %380 = vmatpush1.msra.mxu0 0.0
    %381 = vmatprep.subr.mxu0 0.0
    %382 = vmatpush1.msra.mxu0 0.0
    %383 = vmatprep.subr.mxu0 0.0
    %384 = vmatpush1.msra.mxu0 0.0
    %385 = vmatprep.subr.mxu0 0.0
    %386 = vmatpush1.msra.mxu0 0.0
    %387 = vmatprep.subr.mxu0 0.0
    %388 = vmatpush1.msra.mxu0 0.0
    %389 = vmatprep.subr.mxu0 0.0
    %390 = vmatpush1.msra.mxu0 0.0
    %391 = vmatprep.subr.mxu0 0.0
    %392 = vmatpush1.msra.mxu0 0.0
    %393 = vmatprep.subr.mxu0 0.0
    %394 = vmatpush1.msra.mxu0 0.0
    %395 = vmatprep.subr.mxu0 0.0
    %396 = vmatpush1.msra.mxu0 0.0
    %397 = vmatprep.subr.mxu0 0.0
    %398 = vmatpush1.msra.mxu0 0.0
    %399 = vmatprep.subr.mxu0 0.0
    %400 = vmatpush1.msra.mxu0 0.0
    %401 = vmatprep.subr.mxu0 0.0
    %402 = vmatpush1.msra.mxu0 0.0
    %403 = vmatprep.subr.mxu0 0.0
    %404 = vmatpush1.msra.mxu0 0.0
    %405 = vmatprep.subr.mxu0 0.0
    %406 = vmatpush1.msra.mxu0 0.0
    %407 = vmatprep.mubr.f32.mxu0 0.0
    %408 = vmatmul.mubr.f32.gmra.mrb[0].mxu0 %v338
    %v409 = vpop.f32.mrb[0].mxu0
    %v410 = vadd.f32 0.0, %v409
    %v411 = vpop.f32.mrb[0].mxu0
    %412 = vmatprep.mubr.f32.mxu0 0.0
    %413 = vmatmul.mubr.f32.gmra.mrb[0].mxu0 %v341
    %v414 = vpop.f32.mrb[0].mxu0
    %v415 = vadd.f32 0.0, %v414
    %v416 = vpop.f32.mrb[0].mxu0
    %417 = vdwg.mxu0
    %vm418 = vcmp.eq.s32.totalorder %v51, 32
    %v419 = vsel %vm418, 1.0, %v410
    %v420 = vsel %vm418, 1.0, %v415
    %v421 = vld [vmem:[#allocation5] sm:$0xff]
    %v422 = vld [vmem:[#allocation5 + $0x8] sm:$0xff]
    %v423 = vld [vmem:[#allocation5 + $0x10] sm:$0xff]
    %v424 = vld [vmem:[#allocation5 + $0x18] sm:$0xff]
    %v425 = vld [vmem:[#allocation5 + $0x20] sm:$0xff]
    %v426 = vld [vmem:[#allocation5 + $0x28] sm:$0xff]
    %v427 = vld [vmem:[#allocation5 + $0x30] sm:$0xff]
    %v428 = vld [vmem:[#allocation5 + $0x38] sm:$0xff]
    %v429 = vld [vmem:[#allocation5 + $0x40] sm:$0xff]
    %v430 = vld [vmem:[#allocation5 + $0x48] sm:$0xff]
    %v431 = vld [vmem:[#allocation5 + $0x50] sm:$0xff]
    %v432 = vld [vmem:[#allocation5 + $0x58] sm:$0xff]
    %v433 = vld [vmem:[#allocation5 + $0x60] sm:$0xff]
    %v434 = vld [vmem:[#allocation5 + $0x68] sm:$0xff]
    %v435 = vld [vmem:[#allocation5 + $0x70] sm:$0xff]
    %v436 = vld [vmem:[#allocation5 + $0x78] sm:$0xff]
    %437 = vmatprep.subr.mxu0 0.0
    %438 = vmatpush1.msra.mxu0 %v421
    %439 = vmatprep.subr.mxu0 0.0
    %440 = vmatpush1.msra.mxu0 %v422
    %441 = vmatprep.subr.mxu0 0.0
    %442 = vmatpush1.msra.mxu0 %v423
    %443 = vmatprep.subr.mxu0 0.0
    %444 = vmatpush1.msra.mxu0 %v424
    %445 = vmatprep.subr.mxu0 0.0
    %446 = vmatpush1.msra.mxu0 %v425
    %447 = vmatprep.subr.mxu0 0.0
    %448 = vmatpush1.msra.mxu0 %v426
    %449 = vmatprep.subr.mxu0 0.0
    %450 = vmatpush1.msra.mxu0 %v427
    %451 = vmatprep.subr.mxu0 0.0
    %452 = vmatpush1.msra.mxu0 %v428
    %453 = vmatprep.subr.mxu0 0.0
    %454 = vmatpush1.msra.mxu0 %v429
    %455 = vmatprep.subr.mxu0 0.0
    %456 = vmatpush1.msra.mxu0 %v430
    %457 = vmatprep.subr.mxu0 0.0
    %458 = vmatpush1.msra.mxu0 %v431
    %459 = vmatprep.subr.mxu0 0.0
    %460 = vmatpush1.msra.mxu0 %v432
    %461 = vmatprep.subr.mxu0 0.0
    %462 = vmatpush1.msra.mxu0 %v433
    %463 = vmatprep.subr.mxu0 0.0
    %464 = vmatpush1.msra.mxu0 %v434
    %465 = vmatprep.subr.mxu0 0.0
    %466 = vmatpush1.msra.mxu0 %v435
    %467 = vmatprep.subr.mxu0 0.0
    %468 = vmatpush1.msra.mxu0 %v436
    %469 = vmatprep.subr.mxu0 0.0
    %470 = vmatpush1.msra.mxu0 0.0
    %471 = vmatprep.subr.mxu0 0.0
    %472 = vmatpush1.msra.mxu0 0.0
    %473 = vmatprep.subr.mxu0 0.0
    %474 = vmatpush1.msra.mxu0 0.0
    %475 = vmatprep.subr.mxu0 0.0
    %476 = vmatpush1.msra.mxu0 0.0
    %477 = vmatprep.subr.mxu0 0.0
    %478 = vmatpush1.msra.mxu0 0.0
    %479 = vmatprep.subr.mxu0 0.0
    %480 = vmatpush1.msra.mxu0 0.0
    %481 = vmatprep.subr.mxu0 0.0
    %482 = vmatpush1.msra.mxu0 0.0
    %483 = vmatprep.subr.mxu0 0.0
    %484 = vmatpush1.msra.mxu0 0.0
    %485 = vmatprep.subr.mxu0 0.0
    %486 = vmatpush1.msra.mxu0 0.0
    %487 = vmatprep.subr.mxu0 0.0
    %488 = vmatpush1.msra.mxu0 0.0
    %489 = vmatprep.subr.mxu0 0.0
    %490 = vmatpush1.msra.mxu0 0.0
    %491 = vmatprep.subr.mxu0 0.0
    %492 = vmatpush1.msra.mxu0 0.0
    %493 = vmatprep.subr.mxu0 0.0
    %494 = vmatpush1.msra.mxu0 0.0
    %495 = vmatprep.subr.mxu0 0.0
    %496 = vmatpush1.msra.mxu0 0.0
    %497 = vmatprep.subr.mxu0 0.0
    %498 = vmatpush1.msra.mxu0 0.0
    %499 = vmatprep.subr.mxu0 0.0
    %500 = vmatpush1.msra.mxu0 0.0
    %501 = vmatprep.mubr.f32.mxu0 0.0
    %502 = vmatmul.mubr.f32.gmra.mrb[0].mxu0 %v419
    %v503 = vpop.f32.mrb[0].mxu0
    %v504 = vadd.f32 0.0, %v503
    %v505 = vpop.f32.mrb[0].mxu0
    %506 = vmatprep.mubr.f32.mxu0 0.0
    %507 = vmatmul.mubr.f32.gmra.mrb[0].mxu0 %v420
    %v508 = vpop.f32.mrb[0].mxu0
    %v509 = vadd.f32 0.0, %v508
    %v510 = vpop.f32.mrb[0].mxu0
    %511 = vdwg.mxu0
    %512 = vst [vmem:[#allocation7] sm:$0xff] %v504
    %513 = vst [vmem:[#allocation7 + $0x8] sm:$0xff] %v509
    %514 = vrot.lane.b32.xlu0 %v335, 120
    %v515 = vpop.permute.xlu0 %514
    %516 = vrot.lane.b32.xlu0 %v336, 120
    %v517 = vpop.permute.xlu0 %516
    %v520 = vadd.f32 %v335, %v515
    %v521 = vadd.f32 %v336, %v517
    %vm522 = vcmask 64512
    %523 = vst.msk [vmem:[%s5] sm:$0xff] %vm522, %v520
    %524 = vst.msk [vmem:[%s5 + $0x8] sm:$0xff] %vm522, %v521
    // Predicated region
    $region26: #{tpu_custom_call.1} parent=1 // pred_check
      _
    $region27: #{tpu_custom_call.1} parent=1 // pred_check_branch
      %526 = sbr.rel (0) target = $region29
    $region28: #{tpu_custom_call.1} parent=1 // pred_region
      %s528 = ssub.s32 256, 256
      %529 = vsyncadd [#allocation4], %s528
      %s530 = sshll.u32 [#allocation7], 4
      %s531 = int_to_ptr.vmem [resolvable:$true] %s530
      %536 = dma.vmem_to_hbm [thread:$0]  %s531, 256, %s4, [#allocation4], 128, 128, 8
    $region29: #{tpu_custom_call.1} parent=1 // pred_fallthru
      _
    // Predicated region
    $region30: #{tpu_custom_call.1} parent=1 // pred_check
      _
    $region31: #{tpu_custom_call.1} parent=1 // pred_check_branch
      %538 = sbr.rel (0) target = $region33
    $region32: #{tpu_custom_call.1} parent=1 // pred_region
      _
    $region33: #{tpu_custom_call.1} parent=1 // pred_fallthru
      _
    // Predicated region
    $region34: #{tpu_custom_call.1} parent=1 // pred_check
      _
    $region35: #{tpu_custom_call.1} parent=1 // pred_check_branch
      %540 = sbr.rel (0) target = $region37
    $region36: #{tpu_custom_call.1} parent=1 // pred_region
      %541 = dma.done [#allocation4], 256
    $region37: #{tpu_custom_call.1} parent=1 // pred_fallthru
      _
    // Predicated region
    $region38: #{tpu_custom_call.1} parent=1 // pred_check
      _
    $region39: #{tpu_custom_call.1} parent=1 // pred_check_branch
      %543 = sbr.rel (0) target = $region41
    $region40: #{tpu_custom_call.1} parent=1 // pred_region
      _
    $region41: #{tpu_custom_call.1} parent=1 // pred_fallthru
      _
    %544 = vsyncpa [#allocation3], 1
    %545 = vsyncpa [#allocation6], 1
    %546 = vsyncpa [#allocation4], 1

</llo_original>
